<compile_context>
chip_gen: v5e
topology: v5e:2x2
jax: 0.10.0
libtpu: 0.0.40
codegen_flags: <defaults>
</compile_context>

<pallas_src>
import functools
import numpy as np
import jax
import jax.numpy as jnp
from jax.experimental import pallas as pl
from jax.experimental.pallas import tpu as pltpu

NEG_SLOPE = 0.01  # nn.LeakyReLU default negative_slope


# ---------------------------------------------------------------------------
# Fused kernel: FC + LeakyReLU + (k dilated ConvTranspose1d + sum) as a matmul
# ---------------------------------------------------------------------------
def _decoder_fused_kernel(x_ref, wt_ref, bfc_ref, a_ref, bsum_ref, o_ref):
    # Stage 1: FC on the MXU (f32 operands, f32 accumulate) + bias + LeakyReLU.
    h = jnp.dot(x_ref[...], wt_ref[...], preferred_element_type=jnp.float32)
    h = h + bfc_ref[...]                              # broadcast over batch rows
    h = jnp.maximum(h, NEG_SLOPE * h)                 # single VALU max (no cmp+select)

    # Stage 2: all k dilated transposed convs + their sum folded into one banded
    # matmul on the otherwise-idle MXU; add summed conv bias; sigmoid on the EUP.
    y = jnp.dot(h, a_ref[...], preferred_element_type=jnp.float32)
    o_ref[...] = jax.nn.sigmoid(y + bsum_ref[0])


# ---------------------------------------------------------------------------
# Wrapper: layout plumbing only (lane padding, banded-matrix build, batch tiling)
# ---------------------------------------------------------------------------
def _round_up(x, m):
    return ((x + m - 1) // m) * m


def _vmem_limit_bytes():
    # 75% of the chip's physical VMEM (capped), with a safe fallback.
    try:
        cap = pltpu.get_tpu_info().vmem_capacity_bytes
    except Exception:
        cap = 64 * 1024 * 1024
    return int(min(cap * 3 // 4, 100 * 1024 * 1024))


def _build_banded_conv_matrix(W_conv, *, k, M, Lf, length, Lp, dilation):
    """A[(g*M+c)*Lp + s, t] += W_conv[g,c,j] where t = s - pad_g + j*d_g."""
    KM = k * M
    A = np.zeros((KM * Lp, Lp), np.float32)
    Wc = np.asarray(W_conv, np.float32)
    for g in range(k):
        d = dilation[g]
        pad = d * (Lf - 1) // 2
        for j in range(Lf):
            off = j * d - pad                       # t = s + off
            s_lo = max(0, -off)
            s_hi = min(length, length - off)
            if s_hi <= s_lo:
                continue
            s_idx = np.arange(s_lo, s_hi)
            t_idx = s_idx + off
            for c in range(M):
                ch = g * M + c
                A[ch * Lp + s_idx, t_idx] += Wc[g, c, j]
    return A


def decoder_forward(x, W_fc, b_fc, W_conv, b_conv, *, k, M, Lf, length, dilation):
    B, bottleneck = x.shape
    KM = k * M
    assert (Lf - 1) % 2 == 0, "Lf must be odd so ConvTranspose1d preserves length"
    assert len(dilation) == k

    Lp = _round_up(length, 128)        # lane-dense per-channel / output width
    KMLp = KM * Lp

    # Batch tile: sublane-dense (multiple of 8), grows with B up to 128 rows so
    # larger batches fill the MXU rows; tiny batches stay at one 8-row tile.
    b_tile = max(8, min(128, _round_up(B, 8)))
    B_pad = _round_up(B, b_tile)

    x_p = x.astype(jnp.float32)
    if B_pad != B:
        x_p = jnp.pad(x_p, ((0, B_pad - B), (0, 0)))

    # W_fc^T / b_fc with each channel zero-padded from `length` to Lp lanes, so
    # every in-kernel slice and the output store are vreg-aligned.
    wt = W_fc.T.astype(jnp.float32).reshape(bottleneck, KM, length)
    wt = jnp.pad(wt, ((0, 0), (0, 0), (0, Lp - length))).reshape(bottleneck, KMLp)
    bfc = b_fc.astype(jnp.float32).reshape(KM, length)
    bfc = jnp.pad(bfc, ((0, 0), (0, Lp - length))).reshape(1, KMLp)

    # Banded conv matrix (host-built, static) and summed conv bias (SMEM scalar).
    A = jnp.asarray(_build_banded_conv_matrix(
        W_conv, k=k, M=M, Lf=Lf, length=length, Lp=Lp, dilation=tuple(dilation)))
    bsum = jnp.sum(b_conv).reshape(1).astype(jnp.float32)

    vmem_limit = _vmem_limit_bytes()
    resident_bytes = 4 * (bottleneck * KMLp + KMLp + KMLp * Lp)        # wt + bfc + A
    per_tile_bytes = 4 * (b_tile * bottleneck + b_tile * Lp) * 2       # x/out double buf
    h_bytes = 4 * b_tile * KMLp                                        # h intermediate
    if resident_bytes + per_tile_bytes + h_bytes > vmem_limit:
        # TODO(synk): fall back to a gather-form conv (tap loops over a channel-major
        # scratch) for very large `length` where the banded matrix no longer fits VMEM.
        raise ValueError("Decoder dims too large for the fused banded-matmul kernel")

    out = pl.pallas_call(
        _decoder_fused_kernel,
        out_shape=jax.ShapeDtypeStruct((B_pad, Lp), jnp.float32),
        grid=(B_pad // b_tile,),
        in_specs=[
            pl.BlockSpec((b_tile, bottleneck), lambda b: (b, 0)),   # x, per batch tile
            pl.BlockSpec((bottleneck, KMLp), lambda b: (0, 0)),     # W_fc^T (resident)
            pl.BlockSpec((1, KMLp), lambda b: (0, 0)),              # b_fc   (resident)
            pl.BlockSpec((KMLp, Lp), lambda b: (0, 0)),             # banded conv matrix
            pl.BlockSpec(memory_space=pltpu.MemorySpace.SMEM),      # summed conv bias
        ],
        out_specs=pl.BlockSpec((b_tile, Lp), lambda b: (b, 0)),
        compiler_params=pltpu.CompilerParams(
            dimension_semantics=("parallel",),      # shard batch tiles across TCs (v7x)
            vmem_limit_bytes=vmem_limit,            # generation-aware budget
        ),
    )(x_p, wt, bfc, A, bsum)

    # Drop batch padding and lane padding, restore torch output shape (B, 1, length).
    return out[:B, :length].reshape(B, 1, length)


# ---------------------------------------------------------------------------
# Pure-numpy reference using the *scatter* definition of ConvTranspose1d
# (independent of the banded-matmul formulation used inside the kernel).
# ---------------------------------------------------------------------------
def reference(x, W_fc, b_fc, W_conv, b_conv, *, k, M, Lf, length, dilation):
    x = np.asarray(x, np.float64)
    W_fc = np.asarray(W_fc, np.float64)
    b_fc = np.asarray(b_fc, np.float64)
    W_conv = np.asarray(W_conv, np.float64)
    b_conv = np.asarray(b_conv, np.float64)
    h = x @ W_fc.T + b_fc
    h = np.where(h > 0, h, NEG_SLOPE * h)
    B = x.shape[0]
    hr = h.reshape(B, k * M, length)
    out = np.zeros((B, length), np.float64)
    for kk in range(k):
        d = dilation[kk]
        p = d * (Lf - 1) // 2
        out += b_conv[kk]
        for c in range(M):
            for s in range(length):
                for j in range(Lf):
                    t = s - p + j * d
                    if 0 <= t < length:
                        out[:, t] += hr[:, kk * M + c, s] * W_conv[kk, c, j]
    out = 1.0 / (1.0 + np.exp(-out))
    return out.reshape(B, 1, length)


if __name__ == "__main__":
    # Small, module-consistent shapes
    B = 2
    k, M, Lf = 2, 4, 5
    dilation = (1, 2)
    length = 16
    bottleneck_nn = 32

    key = jax.random.PRNGKey(0)
    kx, kw, kb, kcw, kcb = jax.random.split(key, 5)

    # Deterministic synthetic parameters (PyTorch-like shapes, fan-in scaling)
    W_fc = jax.random.normal(kw, (k * M * length, bottleneck_nn), jnp.float32) / np.sqrt(bottleneck_nn)
    b_fc = 0.01 * jax.random.normal(kb, (k * M * length,), jnp.float32)
    W_conv = jax.random.normal(kcw, (k, M, Lf), jnp.float32) / np.sqrt(M * Lf)
    b_conv = 0.01 * jax.random.normal(kcb, (k,), jnp.float32)
    x = jax.random.normal(kx, (B, bottleneck_nn), jnp.float32)

    y = decoder_forward(x, W_fc, b_fc, W_conv, b_conv,
                        k=k, M=M, Lf=Lf, length=length, dilation=dilation)
    y = jax.block_until_ready(y)

    y_ref = reference(x, W_fc, b_fc, W_conv, b_conv,
                      k=k, M=M, Lf=Lf, length=length, dilation=dilation)
    np.testing.assert_allclose(np.asarray(y, np.float64), y_ref, rtol=1e-3, atol=1e-3)
    assert y.shape == (B, 1, length)

    print("KERNEL_OK")
</pallas_src>

<mosaic_0001>
module attributes {stable_mosaic.version = 11 : i64} {
  func.func @_decoder_fused_kernel(%arg0: i32, %arg1: memref<8x32xf32, #tpu.memory_space<vmem>>, %arg2: memref<32x1024xf32, #tpu.memory_space<vmem>>, %arg3: memref<1x1024xf32, #tpu.memory_space<vmem>>, %arg4: memref<1024x128xf32, #tpu.memory_space<vmem>>, %arg5: memref<1xf32, #tpu.memory_space<smem>>, %arg6: memref<8x128xf32, #tpu.memory_space<vmem>>) attributes {dimension_semantics = [#tpu.dimension_semantics<parallel>], iteration_bounds = array<i64: 1>, scalar_prefetch = 0 : i64, scratch_operands = 0 : i64, tpu.core_type = #tpu.core_type<tc>, window_params = [{transform_indices = @transform_0, window_bounds = array<i64: 8, 32>}, {pipeline_mode = #tpu.pipeline_mode<synchronous>, transform_indices = @transform_1, window_bounds = array<i64: 32, 1024>}, {pipeline_mode = #tpu.pipeline_mode<synchronous>, transform_indices = @transform_2, window_bounds = array<i64: 1, 1024>}, {pipeline_mode = #tpu.pipeline_mode<synchronous>, transform_indices = @transform_3, window_bounds = array<i64: 1024, 128>}, {transform_indices = @transform_4, window_bounds = array<i64: 1>}, {transform_indices = @transform_5, window_bounds = array<i64: 8, 128>}]} {
    %c0 = arith.constant 0 : index
    %c0_0 = arith.constant 0 : index
    %0 = vector.load %arg1[%c0, %c0_0] : memref<8x32xf32, #tpu.memory_space<vmem>>, vector<8x32xf32>
    %c0_1 = arith.constant 0 : index
    %c0_2 = arith.constant 0 : index
    %1 = vector.load %arg2[%c0_1, %c0_2] : memref<32x1024xf32, #tpu.memory_space<vmem>>, vector<32x1024xf32>
    %cst = arith.constant dense<0.000000e+00> : vector<8x1024xf32>
    %2 = tpu.matmul %0, %1, %cst {dimension_numbers = #tpu.dot_dimension_numbers<[1], [0], [0], [1], [0, 0, 1, 1], [], []>} : vector<8x32xf32>, vector<32x1024xf32>, vector<8x1024xf32> -> vector<8x1024xf32>
    %c0_3 = arith.constant 0 : index
    %c0_4 = arith.constant 0 : index
    %3 = vector.load %arg3[%c0_3, %c0_4] : memref<1x1024xf32, #tpu.memory_space<vmem>>, vector<1x1024xf32>
    %4 = vector.broadcast %3 : vector<1x1024xf32> to vector<8x1024xf32>
    %5 = arith.addf %2, %4 : vector<8x1024xf32>
    %cst_5 = arith.constant 0.00999999977 : f32
    %6 = vector.broadcast %cst_5 : f32 to vector<8x1024xf32>
    %7 = arith.mulf %6, %5 : vector<8x1024xf32>
    %8 = arith.maximumf %5, %7 : vector<8x1024xf32>
    %c0_6 = arith.constant 0 : index
    %c0_7 = arith.constant 0 : index
    %9 = vector.load %arg4[%c0_6, %c0_7] : memref<1024x128xf32, #tpu.memory_space<vmem>>, vector<1024x128xf32>
    %cst_8 = arith.constant dense<0.000000e+00> : vector<8x128xf32>
    %10 = tpu.matmul %8, %9, %cst_8 {dimension_numbers = #tpu.dot_dimension_numbers<[1], [0], [0], [1], [0, 0, 1, 1], [], []>} : vector<8x1024xf32>, vector<1024x128xf32>, vector<8x128xf32> -> vector<8x128xf32>
    %c0_9 = arith.constant 0 : index
    %11 = memref.load %arg5[%c0_9] : memref<1xf32, #tpu.memory_space<smem>>
    %12 = vector.broadcast %11 : f32 to vector<8x128xf32>
    %13 = arith.addf %10, %12 : vector<8x128xf32>
    %14 = arith.negf %13 : vector<8x128xf32>
    %15 = math.exp %14 : vector<8x128xf32>
    %cst_10 = arith.constant 1.000000e+00 : f32
    %16 = vector.broadcast %cst_10 : f32 to vector<8x128xf32>
    %17 = arith.addf %16, %15 : vector<8x128xf32>
    %18 = arith.divf %16, %17 : vector<8x128xf32>
    %c0_11 = arith.constant 0 : index
    %c0_12 = arith.constant 0 : index
    %19 = vector.load %arg6[%c0_11, %c0_12] : memref<8x128xf32, #tpu.memory_space<vmem>>, vector<8x128xf32>
    tpu.vector_store %arg6[%c0_11, %c0_12], %18 {strides = array<i32>} : memref<8x128xf32, #tpu.memory_space<vmem>>, vector<8x128xf32>,
    return
  }
  func.func @transform_0(%arg0: i32) -> (i32, i32) {
    %c0_i32 = arith.constant 0 : i32
    %c0_i32_0 = arith.constant 0 : i32
    return %arg0, %c0_i32 : i32, i32
  }
  func.func @transform_1(%arg0: i32) -> (i32, i32) {
    %c0_i32 = arith.constant 0 : i32
    %c0_i32_0 = arith.constant 0 : i32
    %c0_i32_1 = arith.constant 0 : i32
    return %c0_i32, %c0_i32_0 : i32, i32
  }
  func.func @transform_2(%arg0: i32) -> (i32, i32) {
    %c0_i32 = arith.constant 0 : i32
    %c0_i32_0 = arith.constant 0 : i32
    %c0_i32_1 = arith.constant 0 : i32
    return %c0_i32, %c0_i32_0 : i32, i32
  }
  func.func @transform_3(%arg0: i32) -> (i32, i32) {
    %c0_i32 = arith.constant 0 : i32
    %c0_i32_0 = arith.constant 0 : i32
    %c0_i32_1 = arith.constant 0 : i32
    return %c0_i32, %c0_i32_0 : i32, i32
  }
  func.func @transform_4(%arg0: i32) -> i32 {
    %c0_i32 = arith.constant 0 : i32
    %c0_i32_0 = arith.constant 0 : i32
    return %c0_i32 : i32
  }
  func.func @transform_5(%arg0: i32) -> (i32, i32) {
    %c0_i32 = arith.constant 0 : i32
    %c0_i32_0 = arith.constant 0 : i32
    return %arg0, %c0_i32 : i32, i32
  }
}

</mosaic_0001>

<llo_original>
// kernel: tpu_custom_call.1
$region0: #{tpu_custom_call.1}
  #allocation0 [shape = 'u32[]', space=smem, size = 0x4, offset = 0x4, fixed_abs, tag = 'smem constant byte address 0x4 - core index']
  #allocation1 [shape = 'u32[72,128]{1,0:T(1,128)}', space=vmem, size = 0x9000, scoped, tag = 'internal scratch']
  #allocation2 [shape = 'f32[1]{0:T(128)S(6)}', space=smem, size = 0x200, scoped, tag = 'scoped memory for tpu_custom_call.1']
  %s0 = inlined_call_operand.hbm [shape: f32[8,32], index: 0, kind: input, shape index: {}]
  %s1 = inlined_call_operand.hbm [shape: f32[32,1024], index: 1, kind: input, shape index: {}]
  %s2 = inlined_call_operand.hbm [shape: f32[1,1024], index: 2, kind: input, shape index: {}]
  %s3 = inlined_call_operand.hbm [shape: f32[1024,128], index: 3, kind: input, shape index: {}]
  %s4 = inlined_call_operand.<no memory space> [shape: f32[1], index: 4, kind: input, shape index: {}]
  %s5 = inlined_call_operand.hbm [shape: f32[8,128], index: 5, kind: output, shape index: {}]
  %s6 = sld [smem:[#allocation0]]
  $region46: #{tpu_custom_call.1} parent=0
    _
  %s8 = ssub.s32 1, %s6
  %s9 = scalar_select 0, %s8, %s6
  %10 = sst [smem:[#allocation2]] %s4
  $region1: #{tpu_custom_call.1} parent=0
    #allocation3 [shape = 'u8[4096]{0}', space=vmem, size = 0x1000, scoped, tag = 'input window, operand 0, single buffered']
    #allocation4 [shape = 's32[1]{0}', space=sflag, size = 0x4, scoped, tag = 'scoped memory for tpu_custom_call.1']
    #allocation5 [shape = 's32[1]{0}', space=sflag, size = 0x4, scoped, tag = 'scoped memory for tpu_custom_call.1']
    #allocation6 [shape = 'u8[131072]{0}', space=vmem, size = 0x20000, scoped, tag = 'input window, operand 1, single buffered']
    #allocation7 [shape = 's32[1]{0}', space=sflag, size = 0x4, scoped, tag = 'scoped memory for tpu_custom_call.1']
    #allocation8 [shape = 'u8[4096]{0}', space=vmem, size = 0x1000, scoped, tag = 'input window, operand 2, single buffered']
    #allocation9 [shape = 'u8[524288]{0}', space=vmem, size = 0x80000, scoped, tag = 'input window, operand 3, single buffered']
    #allocation10 [shape = 's32[1]{0}', space=sflag, size = 0x4, scoped, tag = 'scoped memory for tpu_custom_call.1']
    #allocation11 [shape = 'u8[4096]{0}', space=vmem, size = 0x1000, scoped, tag = 'output window, operand 0, single buffered']
    %11 = vsyncpa [#allocation4], 0
    %12 = vsyncpa [#allocation7], 0
    %13 = vsyncpa [#allocation10], 0
    %14 = vsyncpa [#allocation5], 0
    // Predicated region
    $region2: #{tpu_custom_call.1} parent=1 // pred_check
      _
    $region3: #{tpu_custom_call.1} parent=1 // pred_check_branch
      %16 = sbr.rel (0) target = $region5
    $region4: #{tpu_custom_call.1} parent=1 // pred_region
      %18 = vsyncadd [#allocation4], 0
      %s20 = sshll.u32 %s0, 4
      %s21 = int_to_ptr.hbm [resolvable:$true] %s20
      %s22 = sshll.u32 [#allocation3], 4
      %s23 = int_to_ptr.vmem [resolvable:$true] %s22
      %25 = dma.hbm_to_vmem [thread:$0]  %s21, 128, %s23, [#allocation4]
    $region5: #{tpu_custom_call.1} parent=1 // pred_fallthru
      _
    // Predicated region
    $region6: #{tpu_custom_call.1} parent=1 // pred_check
      _
    $region7: #{tpu_custom_call.1} parent=1 // pred_check_branch
      %27 = sbr.rel (0) target = $region9
    $region8: #{tpu_custom_call.1} parent=1 // pred_region
      %29 = vsyncadd [#allocation7], 0
      %s30 = sshll.u32 %s1, 4
      %s31 = int_to_ptr.hbm [resolvable:$true] %s30
      %s32 = sshll.u32 [#allocation6], 4
      %s33 = int_to_ptr.vmem [resolvable:$true] %s32
      %38 = dma.hbm_to_vmem [thread:$0]  %s31, 4096, %s33, [#allocation7], 1024, 1024, 64
    $region9: #{tpu_custom_call.1} parent=1 // pred_fallthru
      _
    // Predicated region
    $region10: #{tpu_custom_call.1} parent=1 // pred_check
      _
    $region11: #{tpu_custom_call.1} parent=1 // pred_check_branch
      %40 = sbr.rel (0) target = $region13
    $region12: #{tpu_custom_call.1} parent=1 // pred_region
      %42 = vsyncadd [#allocation7], 0
      %s44 = sshll.u32 %s2, 4
      %s45 = int_to_ptr.hbm [resolvable:$true] %s44
      %s46 = sshll.u32 [#allocation8], 4
      %s47 = int_to_ptr.vmem [resolvable:$true] %s46
      %49 = dma.hbm_to_vmem [thread:$0]  %s45, 128, %s47, [#allocation7]
    $region13: #{tpu_custom_call.1} parent=1 // pred_fallthru
      _
    // Predicated region
    $region14: #{tpu_custom_call.1} parent=1 // pred_check
      _
    $region15: #{tpu_custom_call.1} parent=1 // pred_check_branch
      %51 = sbr.rel (0) target = $region17
    $region16: #{tpu_custom_call.1} parent=1 // pred_region
      %53 = vsyncadd [#allocation10], 0
      %s54 = sshll.u32 %s3, 4
      %s55 = int_to_ptr.hbm [resolvable:$true] %s54
      %s56 = sshll.u32 [#allocation9], 4
      %s57 = int_to_ptr.vmem [resolvable:$true] %s56
      %62 = dma.hbm_to_vmem [thread:$0]  %s55, 16384, %s57, [#allocation10], 128, 128, 8
    $region17: #{tpu_custom_call.1} parent=1 // pred_fallthru
      _
    // Predicated region
    $region18: #{tpu_custom_call.1} parent=1 // pred_check
      _
    $region19: #{tpu_custom_call.1} parent=1 // pred_check_branch
      %64 = sbr.rel (0) target = $region21
    $region20: #{tpu_custom_call.1} parent=1 // pred_region
      _
    $region21: #{tpu_custom_call.1} parent=1 // pred_fallthru
      _
    // Predicated region
    $region22: #{tpu_custom_call.1} parent=1 // pred_check
      _
    $region23: #{tpu_custom_call.1} parent=1 // pred_check_branch
      %66 = sbr.rel (0) target = $region25
    $region24: #{tpu_custom_call.1} parent=1 // pred_region
      %68 = dma.done [#allocation4], 128
    $region25: #{tpu_custom_call.1} parent=1 // pred_fallthru
      _
    // Predicated region
    $region26: #{tpu_custom_call.1} parent=1 // pred_check
      _
    $region27: #{tpu_custom_call.1} parent=1 // pred_check_branch
      %70 = sbr.rel (0) target = $region29
    $region28: #{tpu_custom_call.1} parent=1 // pred_region
      %72 = dma.done [#allocation7], 4096
    $region29: #{tpu_custom_call.1} parent=1 // pred_fallthru
      _
    // Predicated region
    $region30: #{tpu_custom_call.1} parent=1 // pred_check
      _
    $region31: #{tpu_custom_call.1} parent=1 // pred_check_branch
      %74 = sbr.rel (0) target = $region33
    $region32: #{tpu_custom_call.1} parent=1 // pred_region
      %76 = dma.done [#allocation7], 128
    $region33: #{tpu_custom_call.1} parent=1 // pred_fallthru
      _
    // Predicated region
    $region34: #{tpu_custom_call.1} parent=1 // pred_check
      _
    $region35: #{tpu_custom_call.1} parent=1 // pred_check_branch
      %78 = sbr.rel (0) target = $region37
    $region36: #{tpu_custom_call.1} parent=1 // pred_region
      %80 = dma.done [#allocation10], 16384
    $region37: #{tpu_custom_call.1} parent=1 // pred_fallthru
      _
    %v81 = vld [vmem:[#allocation3] sm:$0xff]
    %v82 = vld [vmem:[#allocation6] sm:$0xff]
    %v83 = vld [vmem:[#allocation6 + $0x8] sm:$0xff]
    %v84 = vld [vmem:[#allocation6 + $0x10] sm:$0xff]
    %v85 = vld [vmem:[#allocation6 + $0x18] sm:$0xff]
    %v86 = vld [vmem:[#allocation6 + $0x20] sm:$0xff]
    %v87 = vld [vmem:[#allocation6 + $0x28] sm:$0xff]
    %v88 = vld [vmem:[#allocation6 + $0x30] sm:$0xff]
    %v89 = vld [vmem:[#allocation6 + $0x38] sm:$0xff]
    %v90 = vld [vmem:[#allocation6 + $0x40] sm:$0xff]
    %v91 = vld [vmem:[#allocation6 + $0x48] sm:$0xff]
    %v92 = vld [vmem:[#allocation6 + $0x50] sm:$0xff]
    %v93 = vld [vmem:[#allocation6 + $0x58] sm:$0xff]
    %v94 = vld [vmem:[#allocation6 + $0x60] sm:$0xff]
    %v95 = vld [vmem:[#allocation6 + $0x68] sm:$0xff]
    %v96 = vld [vmem:[#allocation6 + $0x70] sm:$0xff]
    %v97 = vld [vmem:[#allocation6 + $0x78] sm:$0xff]
    %v98 = vld [vmem:[#allocation6 + $0x80] sm:$0xff]
    %v99 = vld [vmem:[#allocation6 + $0x88] sm:$0xff]
    %v100 = vld [vmem:[#allocation6 + $0x90] sm:$0xff]
    %v101 = vld [vmem:[#allocation6 + $0x98] sm:$0xff]
    %v102 = vld [vmem:[#allocation6 + $0xa0] sm:$0xff]
    %v103 = vld [vmem:[#allocation6 + $0xa8] sm:$0xff]
    %v104 = vld [vmem:[#allocation6 + $0xb0] sm:$0xff]
    %v105 = vld [vmem:[#allocation6 + $0xb8] sm:$0xff]
    %v106 = vld [vmem:[#allocation6 + $0xc0] sm:$0xff]
    %v107 = vld [vmem:[#allocation6 + $0xc8] sm:$0xff]
    %v108 = vld [vmem:[#allocation6 + $0xd0] sm:$0xff]
    %v109 = vld [vmem:[#allocation6 + $0xd8] sm:$0xff]
    %v110 = vld [vmem:[#allocation6 + $0xe0] sm:$0xff]
    %v111 = vld [vmem:[#allocation6 + $0xe8] sm:$0xff]
    %v112 = vld [vmem:[#allocation6 + $0xf0] sm:$0xff]
    %v113 = vld [vmem:[#allocation6 + $0xf8] sm:$0xff]
    %v114 = vld [vmem:[#allocation8] sm:$0xff]
    %v116 = vperm.slane %v114, 0
    %v117 = vperm.slane %v114, 1
    %v118 = vperm.slane %v114, 2
    %v119 = vperm.slane %v114, 3
    %v120 = vperm.slane %v114, 4
    %v121 = vperm.slane %v114, 5
    %v122 = vperm.slane %v114, 6
    %v123 = vperm.slane %v114, 7
    %vm132 = vcmask 261120
    %v134 = vsel %vm132, %v81, 0
    %136 = vmatpush.msra.mxu0 0.0
    %137 = vmatpush.msra.mxu0 0.0
    %138 = vmatpush.msra.mxu0 0.0
    %139 = vmatpush.msra.mxu0 0.0
    %140 = vmatpush.msra.mxu0 0.0
    %141 = vmatpush.msra.mxu0 0.0
    %142 = vmatpush.msra.mxu0 0.0
    %143 = vmatpush.msra.mxu0 0.0
    %144 = vmatpush.msra.mxu0 0.0
    %145 = vmatpush.msra.mxu0 0.0
    %146 = vmatpush.msra.mxu0 0.0
    %147 = vmatpush.msra.mxu0 0.0
    %148 = vmatpush.msra.mxu0 %v106
    %149 = vmatpush.msra.mxu0 %v98
    %150 = vmatpush.msra.mxu0 %v90
    %151 = vmatpush.msra.mxu0 %v82
    %152 = vmatmul.f32.gmra.mxu0 %v134
    %v153 = vpop.f32.mrf.mxu0
    %v154 = vadd.f32 %v116, %v153
    %155 = vdwg.mxu0
    %156 = vmatpush.msra.mxu0 0.0
    %157 = vmatpush.msra.mxu0 0.0
    %158 = vmatpush.msra.mxu0 0.0
    %159 = vmatpush.msra.mxu0 0.0
    %160 = vmatpush.msra.mxu0 0.0
    %161 = vmatpush.msra.mxu0 0.0
    %162 = vmatpush.msra.mxu0 0.0
    %163 = vmatpush.msra.mxu0 0.0
    %164 = vmatpush.msra.mxu0 0.0
    %165 = vmatpush.msra.mxu0 0.0
    %166 = vmatpush.msra.mxu0 0.0
    %167 = vmatpush.msra.mxu0 0.0
    %168 = vmatpush.msra.mxu0 %v107
    %169 = vmatpush.msra.mxu0 %v99
    %170 = vmatpush.msra.mxu0 %v91
    %171 = vmatpush.msra.mxu0 %v83
    %172 = vmatmul.f32.gmra.mxu0 %v134
    %v173 = vpop.f32.mrf.mxu0
    %v174 = vadd.f32 %v117, %v173
    %175 = vdwg.mxu0
    %176 = vmatpush.msra.mxu0 0.0
    %177 = vmatpush.msra.mxu0 0.0
    %178 = vmatpush.msra.mxu0 0.0
    %179 = vmatpush.msra.mxu0 0.0
    %180 = vmatpush.msra.mxu0 0.0
    %181 = vmatpush.msra.mxu0 0.0
    %182 = vmatpush.msra.mxu0 0.0
    %183 = vmatpush.msra.mxu0 0.0
    %184 = vmatpush.msra.mxu0 0.0
    %185 = vmatpush.msra.mxu0 0.0
    %186 = vmatpush.msra.mxu0 0.0
    %187 = vmatpush.msra.mxu0 0.0
    %188 = vmatpush.msra.mxu0 %v108
    %189 = vmatpush.msra.mxu0 %v100
    %190 = vmatpush.msra.mxu0 %v92
    %191 = vmatpush.msra.mxu0 %v84
    %192 = vmatmul.f32.gmra.mxu0 %v134
    %v193 = vpop.f32.mrf.mxu0
    %v194 = vadd.f32 %v118, %v193
    %195 = vdwg.mxu0
    %196 = vmatpush.msra.mxu0 0.0
    %197 = vmatpush.msra.mxu0 0.0
    %198 = vmatpush.msra.mxu0 0.0
    %199 = vmatpush.msra.mxu0 0.0
    %200 = vmatpush.msra.mxu0 0.0
    %201 = vmatpush.msra.mxu0 0.0
    %202 = vmatpush.msra.mxu0 0.0
    %203 = vmatpush.msra.mxu0 0.0
    %204 = vmatpush.msra.mxu0 0.0
    %205 = vmatpush.msra.mxu0 0.0
    %206 = vmatpush.msra.mxu0 0.0
    %207 = vmatpush.msra.mxu0 0.0
    %208 = vmatpush.msra.mxu0 %v109
    %209 = vmatpush.msra.mxu0 %v101
    %210 = vmatpush.msra.mxu0 %v93
    %211 = vmatpush.msra.mxu0 %v85
    %212 = vmatmul.f32.gmra.mxu0 %v134
    %v213 = vpop.f32.mrf.mxu0
    %v214 = vadd.f32 %v119, %v213
    %215 = vdwg.mxu0
    %216 = vmatpush.msra.mxu0 0.0
    %217 = vmatpush.msra.mxu0 0.0
    %218 = vmatpush.msra.mxu0 0.0
    %219 = vmatpush.msra.mxu0 0.0
    %220 = vmatpush.msra.mxu0 0.0
    %221 = vmatpush.msra.mxu0 0.0
    %222 = vmatpush.msra.mxu0 0.0
    %223 = vmatpush.msra.mxu0 0.0
    %224 = vmatpush.msra.mxu0 0.0
    %225 = vmatpush.msra.mxu0 0.0
    %226 = vmatpush.msra.mxu0 0.0
    %227 = vmatpush.msra.mxu0 0.0
    %228 = vmatpush.msra.mxu0 %v110
    %229 = vmatpush.msra.mxu0 %v102
    %230 = vmatpush.msra.mxu0 %v94
    %231 = vmatpush.msra.mxu0 %v86
    %232 = vmatmul.f32.gmra.mxu0 %v134
    %v233 = vpop.f32.mrf.mxu0
    %v234 = vadd.f32 %v120, %v233
    %235 = vdwg.mxu0
    %236 = vmatpush.msra.mxu0 0.0
    %237 = vmatpush.msra.mxu0 0.0
    %238 = vmatpush.msra.mxu0 0.0
    %239 = vmatpush.msra.mxu0 0.0
    %240 = vmatpush.msra.mxu0 0.0
    %241 = vmatpush.msra.mxu0 0.0
    %242 = vmatpush.msra.mxu0 0.0
    %243 = vmatpush.msra.mxu0 0.0
    %244 = vmatpush.msra.mxu0 0.0
    %245 = vmatpush.msra.mxu0 0.0
    %246 = vmatpush.msra.mxu0 0.0
    %247 = vmatpush.msra.mxu0 0.0
    %248 = vmatpush.msra.mxu0 %v111
    %249 = vmatpush.msra.mxu0 %v103
    %250 = vmatpush.msra.mxu0 %v95
    %251 = vmatpush.msra.mxu0 %v87
    %252 = vmatmul.f32.gmra.mxu0 %v134
    %v253 = vpop.f32.mrf.mxu0
    %v254 = vadd.f32 %v121, %v253
    %255 = vdwg.mxu0
    %256 = vmatpush.msra.mxu0 0.0
    %257 = vmatpush.msra.mxu0 0.0
    %258 = vmatpush.msra.mxu0 0.0
    %259 = vmatpush.msra.mxu0 0.0
    %260 = vmatpush.msra.mxu0 0.0
    %261 = vmatpush.msra.mxu0 0.0
    %262 = vmatpush.msra.mxu0 0.0
    %263 = vmatpush.msra.mxu0 0.0
    %264 = vmatpush.msra.mxu0 0.0
    %265 = vmatpush.msra.mxu0 0.0
    %266 = vmatpush.msra.mxu0 0.0
    %267 = vmatpush.msra.mxu0 0.0
    %268 = vmatpush.msra.mxu0 %v112
    %269 = vmatpush.msra.mxu0 %v104
    %270 = vmatpush.msra.mxu0 %v96
    %271 = vmatpush.msra.mxu0 %v88
    %272 = vmatmul.f32.gmra.mxu0 %v134
    %v273 = vpop.f32.mrf.mxu0
    %v274 = vadd.f32 %v122, %v273
    %275 = vdwg.mxu0
    %276 = vmatpush.msra.mxu0 0.0
    %277 = vmatpush.msra.mxu0 0.0
    %278 = vmatpush.msra.mxu0 0.0
    %279 = vmatpush.msra.mxu0 0.0
    %280 = vmatpush.msra.mxu0 0.0
    %281 = vmatpush.msra.mxu0 0.0
    %282 = vmatpush.msra.mxu0 0.0
    %283 = vmatpush.msra.mxu0 0.0
    %284 = vmatpush.msra.mxu0 0.0
    %285 = vmatpush.msra.mxu0 0.0
    %286 = vmatpush.msra.mxu0 0.0
    %287 = vmatpush.msra.mxu0 0.0
    %288 = vmatpush.msra.mxu0 %v113
    %289 = vmatpush.msra.mxu0 %v105
    %290 = vmatpush.msra.mxu0 %v97
    %291 = vmatpush.msra.mxu0 %v89
    %292 = vmatmul.f32.gmra.mxu0 %v134
    %v293 = vpop.f32.mrf.mxu0
    %v294 = vadd.f32 %v123, %v293
    %295 = vdwg.mxu0
    %v296 = vmul.f32 %v154, 0.01
    %v297 = vmul.f32 %v174, 0.01
    %v298 = vmul.f32 %v194, 0.01
    %v299 = vmul.f32 %v214, 0.01
    %v300 = vmul.f32 %v234, 0.01
    %v301 = vmul.f32 %v254, 0.01
    %v302 = vmul.f32 %v274, 0.01
    %v303 = vmul.f32 %v294, 0.01
    %v304 = vmax.f32 %v154, %v296
    %v305 = vmax.f32 %v174, %v297
    %v306 = vmax.f32 %v194, %v298
    %v307 = vmax.f32 %v214, %v299
    %v308 = vmax.f32 %v234, %v300
    %v309 = vmax.f32 %v254, %v301
    %v310 = vmax.f32 %v274, %v302
    %v311 = vmax.f32 %v294, %v303
    %v312 = vld [vmem:[#allocation9] sm:$0xff]
    %v313 = vld [vmem:[#allocation9 + $0x8] sm:$0xff]
    %v314 = vld [vmem:[#allocation9 + $0x10] sm:$0xff]
    %v315 = vld [vmem:[#allocation9 + $0x18] sm:$0xff]
    %v316 = vld [vmem:[#allocation9 + $0x20] sm:$0xff]
    %v317 = vld [vmem:[#allocation9 + $0x28] sm:$0xff]
    %v318 = vld [vmem:[#allocation9 + $0x30] sm:$0xff]
    %v319 = vld [vmem:[#allocation9 + $0x38] sm:$0xff]
    %v320 = vld [vmem:[#allocation9 + $0x40] sm:$0xff]
    %v321 = vld [vmem:[#allocation9 + $0x48] sm:$0xff]
    %v322 = vld [vmem:[#allocation9 + $0x50] sm:$0xff]
    %v323 = vld [vmem:[#allocation9 + $0x58] sm:$0xff]
    %v324 = vld [vmem:[#allocation9 + $0x60] sm:$0xff]
    %v325 = vld [vmem:[#allocation9 + $0x68] sm:$0xff]
    %v326 = vld [vmem:[#allocation9 + $0x70] sm:$0xff]
    %v327 = vld [vmem:[#allocation9 + $0x78] sm:$0xff]
    %v328 = vld [vmem:[#allocation9 + $0x80] sm:$0xff]
    %v329 = vld [vmem:[#allocation9 + $0x88] sm:$0xff]
    %v330 = vld [vmem:[#allocation9 + $0x90] sm:$0xff]
    %v331 = vld [vmem:[#allocation9 + $0x98] sm:$0xff]
    %v332 = vld [vmem:[#allocation9 + $0xa0] sm:$0xff]
    %v333 = vld [vmem:[#allocation9 + $0xa8] sm:$0xff]
    %v334 = vld [vmem:[#allocation9 + $0xb0] sm:$0xff]
    %v335 = vld [vmem:[#allocation9 + $0xb8] sm:$0xff]
    %v336 = vld [vmem:[#allocation9 + $0xc0] sm:$0xff]
    %v337 = vld [vmem:[#allocation9 + $0xc8] sm:$0xff]
    %v338 = vld [vmem:[#allocation9 + $0xd0] sm:$0xff]
    %v339 = vld [vmem:[#allocation9 + $0xd8] sm:$0xff]
    %v340 = vld [vmem:[#allocation9 + $0xe0] sm:$0xff]
    %v341 = vld [vmem:[#allocation9 + $0xe8] sm:$0xff]
    %v342 = vld [vmem:[#allocation9 + $0xf0] sm:$0xff]
    %v343 = vld [vmem:[#allocation9 + $0xf8] sm:$0xff]
    %v344 = vld [vmem:[#allocation9 + $0x100] sm:$0xff]
    %v345 = vld [vmem:[#allocation9 + $0x108] sm:$0xff]
    %v346 = vld [vmem:[#allocation9 + $0x110] sm:$0xff]
    %v347 = vld [vmem:[#allocation9 + $0x118] sm:$0xff]
    %v348 = vld [vmem:[#allocation9 + $0x120] sm:$0xff]
    %v349 = vld [vmem:[#allocation9 + $0x128] sm:$0xff]
    %v350 = vld [vmem:[#allocation9 + $0x130] sm:$0xff]
    %v351 = vld [vmem:[#allocation9 + $0x138] sm:$0xff]
    %v352 = vld [vmem:[#allocation9 + $0x140] sm:$0xff]
    %v353 = vld [vmem:[#allocation9 + $0x148] sm:$0xff]
    %v354 = vld [vmem:[#allocation9 + $0x150] sm:$0xff]
    %v355 = vld [vmem:[#allocation9 + $0x158] sm:$0xff]
    %v356 = vld [vmem:[#allocation9 + $0x160] sm:$0xff]
    %v357 = vld [vmem:[#allocation9 + $0x168] sm:$0xff]
    %v358 = vld [vmem:[#allocation9 + $0x170] sm:$0xff]
    %v359 = vld [vmem:[#allocation9 + $0x178] sm:$0xff]
    %v360 = vld [vmem:[#allocation9 + $0x180] sm:$0xff]
    %v361 = vld [vmem:[#allocation9 + $0x188] sm:$0xff]
    %v362 = vld [vmem:[#allocation9 + $0x190] sm:$0xff]
    %v363 = vld [vmem:[#allocation9 + $0x198] sm:$0xff]
    %v364 = vld [vmem:[#allocation9 + $0x1a0] sm:$0xff]
    %v365 = vld [vmem:[#allocation9 + $0x1a8] sm:$0xff]
    %v366 = vld [vmem:[#allocation9 + $0x1b0] sm:$0xff]
    %v367 = vld [vmem:[#allocation9 + $0x1b8] sm:$0xff]
    %v368 = vld [vmem:[#allocation9 + $0x1c0] sm:$0xff]
    %v369 = vld [vmem:[#allocation9 + $0x1c8] sm:$0xff]
    %v370 = vld [vmem:[#allocation9 + $0x1d0] sm:$0xff]
    %v371 = vld [vmem:[#allocation9 + $0x1d8] sm:$0xff]
    %v372 = vld [vmem:[#allocation9 + $0x1e0] sm:$0xff]
    %v373 = vld [vmem:[#allocation9 + $0x1e8] sm:$0xff]
    %v374 = vld [vmem:[#allocation9 + $0x1f0] sm:$0xff]
    %v375 = vld [vmem:[#allocation9 + $0x1f8] sm:$0xff]
    %v376 = vld [vmem:[#allocation9 + $0x200] sm:$0xff]
    %v377 = vld [vmem:[#allocation9 + $0x208] sm:$0xff]
    %v378 = vld [vmem:[#allocation9 + $0x210] sm:$0xff]
    %v379 = vld [vmem:[#allocation9 + $0x218] sm:$0xff]
    %v380 = vld [vmem:[#allocation9 + $0x220] sm:$0xff]
    %v381 = vld [vmem:[#allocation9 + $0x228] sm:$0xff]
    %v382 = vld [vmem:[#allocation9 + $0x230] sm:$0xff]
    %v383 = vld [vmem:[#allocation9 + $0x238] sm:$0xff]
    %v384 = vld [vmem:[#allocation9 + $0x240] sm:$0xff]
    %v385 = vld [vmem:[#allocation9 + $0x248] sm:$0xff]
    %v386 = vld [vmem:[#allocation9 + $0x250] sm:$0xff]
    %v387 = vld [vmem:[#allocation9 + $0x258] sm:$0xff]
    %v388 = vld [vmem:[#allocation9 + $0x260] sm:$0xff]
    %v389 = vld [vmem:[#allocation9 + $0x268] sm:$0xff]
    %v390 = vld [vmem:[#allocation9 + $0x270] sm:$0xff]
    %v391 = vld [vmem:[#allocation9 + $0x278] sm:$0xff]
    %v392 = vld [vmem:[#allocation9 + $0x280] sm:$0xff]
    %v393 = vld [vmem:[#allocation9 + $0x288] sm:$0xff]
    %v394 = vld [vmem:[#allocation9 + $0x290] sm:$0xff]
    %v395 = vld [vmem:[#allocation9 + $0x298] sm:$0xff]
    %v396 = vld [vmem:[#allocation9 + $0x2a0] sm:$0xff]
    %v397 = vld [vmem:[#allocation9 + $0x2a8] sm:$0xff]
    %v398 = vld [vmem:[#allocation9 + $0x2b0] sm:$0xff]
    %v399 = vld [vmem:[#allocation9 + $0x2b8] sm:$0xff]
    %v400 = vld [vmem:[#allocation9 + $0x2c0] sm:$0xff]
    %v401 = vld [vmem:[#allocation9 + $0x2c8] sm:$0xff]
    %v402 = vld [vmem:[#allocation9 + $0x2d0] sm:$0xff]
    %v403 = vld [vmem:[#allocation9 + $0x2d8] sm:$0xff]
    %v404 = vld [vmem:[#allocation9 + $0x2e0] sm:$0xff]
    %v405 = vld [vmem:[#allocation9 + $0x2e8] sm:$0xff]
    %v406 = vld [vmem:[#allocation9 + $0x2f0] sm:$0xff]
    %v407 = vld [vmem:[#allocation9 + $0x2f8] sm:$0xff]
    %v408 = vld [vmem:[#allocation9 + $0x300] sm:$0xff]
    %v409 = vld [vmem:[#allocation9 + $0x308] sm:$0xff]
    %v410 = vld [vmem:[#allocation9 + $0x310] sm:$0xff]
    %v411 = vld [vmem:[#allocation9 + $0x318] sm:$0xff]
    %v412 = vld [vmem:[#allocation9 + $0x320] sm:$0xff]
    %v413 = vld [vmem:[#allocation9 + $0x328] sm:$0xff]
    %v414 = vld [vmem:[#allocation9 + $0x330] sm:$0xff]
    %v415 = vld [vmem:[#allocation9 + $0x338] sm:$0xff]
    %v416 = vld [vmem:[#allocation9 + $0x340] sm:$0xff]
    %v417 = vld [vmem:[#allocation9 + $0x348] sm:$0xff]
    %v418 = vld [vmem:[#allocation9 + $0x350] sm:$0xff]
    %v419 = vld [vmem:[#allocation9 + $0x358] sm:$0xff]
    %v420 = vld [vmem:[#allocation9 + $0x360] sm:$0xff]
    %v421 = vld [vmem:[#allocation9 + $0x368] sm:$0xff]
    %v422 = vld [vmem:[#allocation9 + $0x370] sm:$0xff]
    %v423 = vld [vmem:[#allocation9 + $0x378] sm:$0xff]
    %v424 = vld [vmem:[#allocation9 + $0x380] sm:$0xff]
    %v425 = vld [vmem:[#allocation9 + $0x388] sm:$0xff]
    %v426 = vld [vmem:[#allocation9 + $0x390] sm:$0xff]
    %v427 = vld [vmem:[#allocation9 + $0x398] sm:$0xff]
    %v428 = vld [vmem:[#allocation9 + $0x3a0] sm:$0xff]
    %v429 = vld [vmem:[#allocation9 + $0x3a8] sm:$0xff]
    %v430 = vld [vmem:[#allocation9 + $0x3b0] sm:$0xff]
    %v431 = vld [vmem:[#allocation9 + $0x3b8] sm:$0xff]
    %v432 = vld [vmem:[#allocation9 + $0x3c0] sm:$0xff]
    %v433 = vld [vmem:[#allocation9 + $0x3c8] sm:$0xff]
    %v434 = vld [vmem:[#allocation9 + $0x3d0] sm:$0xff]
    %v435 = vld [vmem:[#allocation9 + $0x3d8] sm:$0xff]
    %v436 = vld [vmem:[#allocation9 + $0x3e0] sm:$0xff]
    %v437 = vld [vmem:[#allocation9 + $0x3e8] sm:$0xff]
    %v438 = vld [vmem:[#allocation9 + $0x3f0] sm:$0xff]
    %v439 = vld [vmem:[#allocation9 + $0x3f8] sm:$0xff]
    %s440 = sld [smem:[#allocation2]]
    %v441 = vstv %s440
    %442 = vmatpush.msra.mxu0 %v327
    %443 = vmatpush.msra.mxu0 %v326
    %444 = vmatpush.msra.mxu0 %v325
    %445 = vmatpush.msra.mxu0 %v324
    %446 = vmatpush.msra.mxu0 %v323
    %447 = vmatpush.msra.mxu0 %v322
    %448 = vmatpush.msra.mxu0 %v321
    %449 = vmatpush.msra.mxu0 %v320
    %450 = vmatpush.msra.mxu0 %v319
    %451 = vmatpush.msra.mxu0 %v318
    %452 = vmatpush.msra.mxu0 %v317
    %453 = vmatpush.msra.mxu0 %v316
    %454 = vmatpush.msra.mxu0 %v315
    %455 = vmatpush.msra.mxu0 %v314
    %456 = vmatpush.msra.mxu0 %v313
    %457 = vmatpush.msra.mxu0 %v312
    %458 = vmatmul.f32.gmra.mxu0 %v304
    %v459 = vpop.f32.mrf.mxu0
    %v460 = vadd.f32 %v441, %v459
    %461 = vdwg.mxu0
    %462 = vmatpush.msra.mxu0 %v343
    %463 = vmatpush.msra.mxu0 %v342
    %464 = vmatpush.msra.mxu0 %v341
    %465 = vmatpush.msra.mxu0 %v340
    %466 = vmatpush.msra.mxu0 %v339
    %467 = vmatpush.msra.mxu0 %v338
    %468 = vmatpush.msra.mxu0 %v337
    %469 = vmatpush.msra.mxu0 %v336
    %470 = vmatpush.msra.mxu0 %v335
    %471 = vmatpush.msra.mxu0 %v334
    %472 = vmatpush.msra.mxu0 %v333
    %473 = vmatpush.msra.mxu0 %v332
    %474 = vmatpush.msra.mxu0 %v331
    %475 = vmatpush.msra.mxu0 %v330
    %476 = vmatpush.msra.mxu0 %v329
    %477 = vmatpush.msra.mxu0 %v328
    %478 = vmatmul.f32.gmra.mxu0 %v305
    %v479 = vpop.f32.mrf.mxu0
    %v480 = vadd.f32 %v460, %v479
    %481 = vdwg.mxu0
    %482 = vmatpush.msra.mxu0 %v359
    %483 = vmatpush.msra.mxu0 %v358
    %484 = vmatpush.msra.mxu0 %v357
    %485 = vmatpush.msra.mxu0 %v356
    %486 = vmatpush.msra.mxu0 %v355
    %487 = vmatpush.msra.mxu0 %v354
    %488 = vmatpush.msra.mxu0 %v353
    %489 = vmatpush.msra.mxu0 %v352
    %490 = vmatpush.msra.mxu0 %v351
    %491 = vmatpush.msra.mxu0 %v350
    %492 = vmatpush.msra.mxu0 %v349
    %493 = vmatpush.msra.mxu0 %v348
    %494 = vmatpush.msra.mxu0 %v347
    %495 = vmatpush.msra.mxu0 %v346
    %496 = vmatpush.msra.mxu0 %v345
    %497 = vmatpush.msra.mxu0 %v344
    %498 = vmatmul.f32.gmra.mxu0 %v306
    %v499 = vpop.f32.mrf.mxu0
    %v500 = vadd.f32 %v480, %v499
    %501 = vdwg.mxu0
    %502 = vmatpush.msra.mxu0 %v375
    %503 = vmatpush.msra.mxu0 %v374
    %504 = vmatpush.msra.mxu0 %v373
    %505 = vmatpush.msra.mxu0 %v372
    %506 = vmatpush.msra.mxu0 %v371
    %507 = vmatpush.msra.mxu0 %v370
    %508 = vmatpush.msra.mxu0 %v369
    %509 = vmatpush.msra.mxu0 %v368
    %510 = vmatpush.msra.mxu0 %v367
    %511 = vmatpush.msra.mxu0 %v366
    %512 = vmatpush.msra.mxu0 %v365
    %513 = vmatpush.msra.mxu0 %v364
    %514 = vmatpush.msra.mxu0 %v363
    %515 = vmatpush.msra.mxu0 %v362
    %516 = vmatpush.msra.mxu0 %v361
    %517 = vmatpush.msra.mxu0 %v360
    %518 = vmatmul.f32.gmra.mxu0 %v307
    %v519 = vpop.f32.mrf.mxu0
    %v520 = vadd.f32 %v500, %v519
    %521 = vdwg.mxu0
    %522 = vmatpush.msra.mxu0 %v391
    %523 = vmatpush.msra.mxu0 %v390
    %524 = vmatpush.msra.mxu0 %v389
    %525 = vmatpush.msra.mxu0 %v388
    %526 = vmatpush.msra.mxu0 %v387
    %527 = vmatpush.msra.mxu0 %v386
    %528 = vmatpush.msra.mxu0 %v385
    %529 = vmatpush.msra.mxu0 %v384
    %530 = vmatpush.msra.mxu0 %v383
    %531 = vmatpush.msra.mxu0 %v382
    %532 = vmatpush.msra.mxu0 %v381
    %533 = vmatpush.msra.mxu0 %v380
    %534 = vmatpush.msra.mxu0 %v379
    %535 = vmatpush.msra.mxu0 %v378
    %536 = vmatpush.msra.mxu0 %v377
    %537 = vmatpush.msra.mxu0 %v376
    %538 = vmatmul.f32.gmra.mxu0 %v308
    %v539 = vpop.f32.mrf.mxu0
    %v540 = vadd.f32 %v520, %v539
    %541 = vdwg.mxu0
    %542 = vmatpush.msra.mxu0 %v407
    %543 = vmatpush.msra.mxu0 %v406
    %544 = vmatpush.msra.mxu0 %v405
    %545 = vmatpush.msra.mxu0 %v404
    %546 = vmatpush.msra.mxu0 %v403
    %547 = vmatpush.msra.mxu0 %v402
    %548 = vmatpush.msra.mxu0 %v401
    %549 = vmatpush.msra.mxu0 %v400
    %550 = vmatpush.msra.mxu0 %v399
    %551 = vmatpush.msra.mxu0 %v398
    %552 = vmatpush.msra.mxu0 %v397
    %553 = vmatpush.msra.mxu0 %v396
    %554 = vmatpush.msra.mxu0 %v395
    %555 = vmatpush.msra.mxu0 %v394
    %556 = vmatpush.msra.mxu0 %v393
    %557 = vmatpush.msra.mxu0 %v392
    %558 = vmatmul.f32.gmra.mxu0 %v309
    %v559 = vpop.f32.mrf.mxu0
    %v560 = vadd.f32 %v540, %v559
    %561 = vdwg.mxu0
    %562 = vmatpush.msra.mxu0 %v423
    %563 = vmatpush.msra.mxu0 %v422
    %564 = vmatpush.msra.mxu0 %v421
    %565 = vmatpush.msra.mxu0 %v420
    %566 = vmatpush.msra.mxu0 %v419
    %567 = vmatpush.msra.mxu0 %v418
    %568 = vmatpush.msra.mxu0 %v417
    %569 = vmatpush.msra.mxu0 %v416
    %570 = vmatpush.msra.mxu0 %v415
    %571 = vmatpush.msra.mxu0 %v414
    %572 = vmatpush.msra.mxu0 %v413
    %573 = vmatpush.msra.mxu0 %v412
    %574 = vmatpush.msra.mxu0 %v411
    %575 = vmatpush.msra.mxu0 %v410
    %576 = vmatpush.msra.mxu0 %v409
    %577 = vmatpush.msra.mxu0 %v408
    %578 = vmatmul.f32.gmra.mxu0 %v310
    %v579 = vpop.f32.mrf.mxu0
    %v580 = vadd.f32 %v560, %v579
    %581 = vdwg.mxu0
    %582 = vmatpush.msra.mxu0 %v439
    %583 = vmatpush.msra.mxu0 %v438
    %584 = vmatpush.msra.mxu0 %v437
    %585 = vmatpush.msra.mxu0 %v436
    %586 = vmatpush.msra.mxu0 %v435
    %587 = vmatpush.msra.mxu0 %v434
    %588 = vmatpush.msra.mxu0 %v433
    %589 = vmatpush.msra.mxu0 %v432
    %590 = vmatpush.msra.mxu0 %v431
    %591 = vmatpush.msra.mxu0 %v430
    %592 = vmatpush.msra.mxu0 %v429
    %593 = vmatpush.msra.mxu0 %v428
    %594 = vmatpush.msra.mxu0 %v427
    %595 = vmatpush.msra.mxu0 %v426
    %596 = vmatpush.msra.mxu0 %v425
    %597 = vmatpush.msra.mxu0 %v424
    %598 = vmatmul.f32.gmra.mxu0 %v311
    %v599 = vpop.f32.mrf.mxu0
    %v600 = vadd.f32 %v580, %v599
    %601 = vdwg.mxu0
    %v602 = vxor.u32 %v600, 2147483648
    %v603 = vmul.f32 %v602, 1.442695
    %v604 = vpow.pop %v603
    %v605 = vadd.f32 %v604, 1.0
    %v606 = vrcp.pop %v605
    %v607 = vmul.f32 %v605, %v606
    %v608 = vsub.f32 1.0, %v607
    %v609 = vmul.f32 %v606, %v608
    %v610 = vadd.f32 %v606, %v609
    %vm611 = vweird.f32 %v605
    %vm612 = vweird.f32 %v606
    %vm613 = vmor %vm611, %vm612
    %v614 = vsel %vm613, %v606, %v610
    %v615 = vand.u32 2147483647, %v605
    %vm616 = vcmp.eq.f32.partialorder %v615, 8.507059e+37
    %v617 = vand.u32 %v605, 2147483648
    %v618 = vor.u32 1.1754944e-38, %v617
    %v619 = vsel %vm616, %v618, %v614
    %v620 = vmul.f32 1.0, %v619
    %621 = vst [vmem:[#allocation11] sm:$0xff] %v620
    // Predicated region
    $region38: #{tpu_custom_call.1} parent=1 // pred_check
      _
    $region39: #{tpu_custom_call.1} parent=1 // pred_check_branch
      %623 = sbr.rel (0) target = $region41
    $region40: #{tpu_custom_call.1} parent=1 // pred_region
      %625 = vsyncadd [#allocation5], 0
      %s627 = sshll.u32 [#allocation11], 4
      %s628 = int_to_ptr.vmem [resolvable:$true] %s627
      %s629 = sshll.u32 %s5, 4
      %s630 = int_to_ptr.hbm [resolvable:$true] %s629
      %632 = dma.vmem_to_hbm [thread:$0]  %s628, 128, %s630, [#allocation5]
    $region41: #{tpu_custom_call.1} parent=1 // pred_fallthru
      _
    // Predicated region
    $region42: #{tpu_custom_call.1} parent=1 // pred_check
      _
    $region43: #{tpu_custom_call.1} parent=1 // pred_check_branch
      %634 = sbr.rel (0) target = $region45
    $region44: #{tpu_custom_call.1} parent=1 // pred_region
      %636 = dma.done [#allocation5], 128
    $region45: #{tpu_custom_call.1} parent=1 // pred_fallthru
      _
    %637 = vsyncpa [#allocation4], 1
    %638 = vsyncpa [#allocation7], 1
    %639 = vsyncpa [#allocation10], 1
    %640 = vsyncpa [#allocation5], 1

</llo_original>
